<compile_context>
chip_gen: v7x
topology: tpu7x:2x2x1
jax: 0.10.0
libtpu: 0.0.40
codegen_flags: <defaults>
</compile_context>

<pallas_src>
import functools

import jax
import jax.numpy as jnp
from jax.experimental import pallas as pl
from jax.experimental.pallas import tpu as pltpu

_LANES = 128
_SUBLANES = 8
_MAX_ROW_TILE = 8192   # 8192 * 128 * 4B = 4 MiB f32 per input block


def _mse_kernel(pred_ref, real_ref, out_ref, *,
                rows, row_tile, acc_rows, nblocks, ragged):
    i = pl.program_id(0)

    @pl.when(i == 0)
    def _():
        out_ref[...] = jnp.zeros_like(out_ref)

    d = real_ref[...].astype(jnp.float32) - pred_ref[...].astype(jnp.float32)
    sq = d * d

    def accumulate(vals):
        # Leading-axis sum = pure VPU vreg adds into an (acc_rows, 128) slab.
        out_ref[...] += vals.reshape(row_tile // acc_rows, acc_rows, _LANES).sum(axis=0)

    if ragged:
        last = nblocks - 1

        @pl.when(i != last)
        def _():
            # Bulk fast path: no masking (3 VALU ops / element).
            accumulate(sq)

        @pl.when(i == last)
        def _():
            # Ragged edge block: sublanes past `rows` hold unspecified data
            # (possibly NaN/Inf); the element-wise select discards them.
            row_ids = last * row_tile + jax.lax.broadcasted_iota(
                jnp.int32, sq.shape, 0)
            accumulate(jnp.where(row_ids < rows, sq, jnp.float32(0.0)))
    else:
        accumulate(sq)


def mse_pallas(pred: jax.Array, real: jax.Array) -> jax.Array:
    assert pred.shape == real.shape, "pred/real must have the same shape"
    n = pred.size

    pred_flat = pred.reshape(-1)
    real_flat = real.reshape(-1)
    rows = n // _LANES

    if rows < _SUBLANES:
        # Tiny-input fast path (< 1024 elements): launch/step overhead would
        # dominate; plain XLA is already optimal here.
        d = real_flat.astype(jnp.float32) - pred_flat.astype(jnp.float32)
        return jnp.sum(d * d) / n

    bulk = rows * _LANES
    if bulk == n:
        # Common case: contiguous reshape, no copy.
        pred2d = pred.reshape(rows, _LANES)
        real2d = real.reshape(rows, _LANES)
        tail_sum = jnp.float32(0.0)
    else:
        # Sub-128 ragged tail: bulk goes through the kernel, the <128-element
        # tail is a tiny XLA reduction (no full-array pad copy).
        pred2d = pred_flat[:bulk].reshape(rows, _LANES)
        real2d = real_flat[:bulk].reshape(rows, _LANES)
        dt = real_flat[bulk:].astype(jnp.float32) - pred_flat[bulk:].astype(jnp.float32)
        tail_sum = jnp.sum(dt * dt)

    # row_tile: largest multiple of 8 that is <= rows and <= _MAX_ROW_TILE.
    row_tile = min(_MAX_ROW_TILE, (rows // _SUBLANES) * _SUBLANES)
    nblocks = pl.cdiv(rows, row_tile)
    ragged = (rows % row_tile) != 0
    # Wider accumulator -> more independent add chains (latency hiding).
    acc_rows = next(c for c in (64, 32, 16, 8) if row_tile % c == 0)

    kernel = functools.partial(
        _mse_kernel, rows=rows, row_tile=row_tile, acc_rows=acc_rows,
        nblocks=nblocks, ragged=ragged)

    itemsize = jnp.dtype(pred.dtype).itemsize
    cost = pl.CostEstimate(
        flops=3 * bulk,
        transcendentals=0,
        bytes_accessed=2 * bulk * itemsize + acc_rows * _LANES * 4,
    )

    partials = pl.pallas_call(
        kernel,
        out_shape=jax.ShapeDtypeStruct((acc_rows, _LANES), jnp.float32),
        grid_spec=pltpu.PrefetchScalarGridSpec(
            num_scalar_prefetch=0,
            grid=(nblocks,),
            in_specs=[
                pl.BlockSpec((row_tile, _LANES), lambda i: (i, 0)),
                pl.BlockSpec((row_tile, _LANES), lambda i: (i, 0)),
            ],
            out_specs=pl.BlockSpec((acc_rows, _LANES), lambda i: (0, 0)),
        ),
        compiler_params=pltpu.CompilerParams(
            dimension_semantics=("arbitrary",),
            vmem_limit_bytes=32 * 1024 * 1024,
        ),
        cost_estimate=cost,
    )(pred2d, real2d)

    # One tiny cross-lane reduce outside the kernel (at most 64x128 f32).
    return (jnp.sum(partials) + tail_sum) / n


def mse_reference(pred: jax.Array, real: jax.Array) -> jax.Array:
    d = real.astype(jnp.float32) - pred.astype(jnp.float32)
    return jnp.sum(d * d) / d.size


if __name__ == "__main__":
    key = jax.random.PRNGKey(0)

    # Primary small NCHW-like input, consistent with the module's elementwise usage.
    k1, k2, key = jax.random.split(key, 3)
    shape = (2, 4, 16, 16)
    pred = jax.random.normal(k1, shape, dtype=jnp.float32)
    real = jax.random.normal(k2, shape, dtype=jnp.float32)

    out = mse_pallas(pred, real)
    jax.block_until_ready(out)
    ref = mse_reference(pred, real)
    assert jnp.allclose(out, ref, rtol=1e-5, atol=1e-6), (out, ref)

    # Ragged numel (row-ragged last block + <128-element XLA tail).
    k1, k2, key = jax.random.split(key, 3)
    shape2 = (3, 5, 7, 11)
    p2 = jax.random.normal(k1, shape2, dtype=jnp.float32)
    r2 = jax.random.normal(k2, shape2, dtype=jnp.float32)
    o2 = mse_pallas(p2, r2)
    jax.block_until_ready(o2)
    assert jnp.allclose(o2, mse_reference(p2, r2), rtol=1e-5, atol=1e-6)

    # Lane-aligned multi-dim input -> single large block, unmasked path.
    k1, k2, key = jax.random.split(key, 3)
    shape3 = (2, 8, 128, 160)   # 327680 elems -> 2560 rows, one block
    p3 = jax.random.normal(k1, shape3, dtype=jnp.float32)
    r3 = jax.random.normal(k2, shape3, dtype=jnp.float32)
    o3 = mse_pallas(p3, r3)
    jax.block_until_ready(o3)
    assert jnp.allclose(o3, mse_reference(p3, r3), rtol=1e-5, atol=1e-6)

    # Multiple row-tiles with a ragged last block (bulk fast path + gated mask).
    k1, k2, key = jax.random.split(key, 3)
    shape4 = (3, 3064, 128)     # 9192 rows -> blocks of 8192 + ragged 1000
    p4 = jax.random.normal(k1, shape4, dtype=jnp.float32)
    r4 = jax.random.normal(k2, shape4, dtype=jnp.float32)
    o4 = mse_pallas(p4, r4)
    jax.block_until_ready(o4)
    assert jnp.allclose(o4, mse_reference(p4, r4), rtol=1e-5, atol=1e-6)

    # Tiny input (< 1024 elements) exercises the XLA fast path.
    k1, k2, key = jax.random.split(key, 3)
    p5 = jax.random.normal(k1, (4, 20), dtype=jnp.float32)
    r5 = jax.random.normal(k2, (4, 20), dtype=jnp.float32)
    o5 = mse_pallas(p5, r5)
    jax.block_until_ready(o5)
    assert jnp.allclose(o5, mse_reference(p5, r5), rtol=1e-5, atol=1e-6)

    print("KERNEL_OK")
</pallas_src>

<mosaic_0001>
module attributes {stable_mosaic.version = 11 : i64} {
  func.func @_mse_kernel(%arg0: i32, %arg1: memref<16x128xf32, #tpu.memory_space<vmem>>, %arg2: memref<16x128xf32, #tpu.memory_space<vmem>>, %arg3: memref<16x128xf32, #tpu.memory_space<vmem>>) attributes {dimension_semantics = [#tpu.dimension_semantics<arbitrary>], iteration_bounds = array<i64: 1>, scalar_prefetch = 0 : i64, scratch_operands = 0 : i64, tpu.core_type = #tpu.core_type<tc>, window_params = [{transform_indices = @transform_0, window_bounds = array<i64: 16, 128>}, {transform_indices = @transform_1, window_bounds = array<i64: 16, 128>}, {pipeline_mode = #tpu.pipeline_mode<synchronous>, transform_indices = @transform_2, window_bounds = array<i64: 16, 128>}]} {
    %c0_i32 = arith.constant 0 : i32
    %0 = arith.cmpi eq, %arg0, %c0_i32 : i32
    %1 = arith.extui %0 : i1 to i32
    %c0_i32_0 = arith.constant 0 : i32
    %2 = arith.cmpi ne, %1, %c0_i32_0 : i32
    scf.if %2 {
      %cst_8 = arith.constant 0.000000e+00 : f32
      %12 = vector.broadcast %cst_8 : f32 to vector<16x128xf32>
      %c0_9 = arith.constant 0 : index
      %c0_10 = arith.constant 0 : index
      %13 = vector.load %arg3[%c0_9, %c0_10] : memref<16x128xf32, #tpu.memory_space<vmem>>, vector<16x128xf32>
      tpu.vector_store %arg3[%c0_9, %c0_10], %12 {strides = array<i32>} : memref<16x128xf32, #tpu.memory_space<vmem>>, vector<16x128xf32>,
    } else {
    }
    %c0 = arith.constant 0 : index
    %c0_1 = arith.constant 0 : index
    %3 = vector.load %arg2[%c0, %c0_1] : memref<16x128xf32, #tpu.memory_space<vmem>>, vector<16x128xf32>
    %c0_2 = arith.constant 0 : index
    %c0_3 = arith.constant 0 : index
    %4 = vector.load %arg1[%c0_2, %c0_3] : memref<16x128xf32, #tpu.memory_space<vmem>>, vector<16x128xf32>
    %5 = arith.subf %3, %4 : vector<16x128xf32>
    %6 = arith.mulf %5, %5 : vector<16x128xf32>
    %c0_4 = arith.constant 0 : index
    %c0_5 = arith.constant 0 : index
    %7 = vector.load %arg3[%c0_4, %c0_5] : memref<16x128xf32, #tpu.memory_space<vmem>>, vector<16x128xf32>
    %8 = vector.shape_cast %6 : vector<16x128xf32> to vector<1x16x128xf32>
    %cst = arith.constant dense<0.000000e+00> : vector<16x128xf32>
    %9 = vector.multi_reduction <add>, %8, %cst [0] : vector<1x16x128xf32> to vector<16x128xf32>
    %10 = arith.addf %7, %9 : vector<16x128xf32>
    %c0_6 = arith.constant 0 : index
    %c0_7 = arith.constant 0 : index
    %11 = vector.load %arg3[%c0_6, %c0_7] : memref<16x128xf32, #tpu.memory_space<vmem>>, vector<16x128xf32>
    tpu.vector_store %arg3[%c0_6, %c0_7], %10 {strides = array<i32>} : memref<16x128xf32, #tpu.memory_space<vmem>>, vector<16x128xf32>,
    return
  }
  func.func @transform_0(%arg0: i32) -> (i32, i32) {
    %c0_i32 = arith.constant 0 : i32
    %c0_i32_0 = arith.constant 0 : i32
    return %arg0, %c0_i32 : i32, i32
  }
  func.func @transform_1(%arg0: i32) -> (i32, i32) {
    %c0_i32 = arith.constant 0 : i32
    %c0_i32_0 = arith.constant 0 : i32
    return %arg0, %c0_i32 : i32, i32
  }
  func.func @transform_2(%arg0: i32) -> (i32, i32) {
    %c0_i32 = arith.constant 0 : i32
    %c0_i32_0 = arith.constant 0 : i32
    %c0_i32_1 = arith.constant 0 : i32
    return %c0_i32, %c0_i32_0 : i32, i32
  }
}

</mosaic_0001>

<llo_original>
// kernel: tpu_custom_call.1
$region0: #{tpu_custom_call.1}
  #allocation0 [shape = 'u32[]', space=smem, size = 0x4, offset = 0x4, fixed_abs, tag = 'smem constant byte address 0x4 - core index']
  #allocation1 [shape = 'u32[144,128]{1,0:T(1,128)}', space=vmem, size = 0x12000, scoped, tag = 'internal scratch']
  %s0 = inlined_call_operand.hbm [shape: f32[16,128], index: 0, kind: input, shape index: {}]
  %s1 = inlined_call_operand.hbm [shape: f32[16,128], index: 1, kind: input, shape index: {}]
  %s2 = inlined_call_operand.hbm [shape: f32[16,128], index: 2, kind: output, shape index: {}]
  %s3 = sld [smem:[#allocation0]]
  $region30: #{tpu_custom_call.1} parent=0
    _
  %s5 = ssub.s32 1, %s3
  %s6 = scalar_select 0, %s5, %s3
  $region1: #{tpu_custom_call.1} parent=0
    #allocation2 [shape = 'u8[8192]{0}', space=vmem, size = 0x2000, scoped, tag = 'input window, operand 0, single buffered']
    #allocation3 [shape = 's32[1]{0}', space=sflag, size = 0x4, scoped, tag = 'scoped memory for tpu_custom_call.1']
    #allocation4 [shape = 's32[1]{0}', space=sflag, size = 0x4, scoped, tag = 'scoped memory for tpu_custom_call.1']
    #allocation5 [shape = 'u8[8192]{0}', space=vmem, size = 0x2000, scoped, tag = 'input window, operand 1, single buffered']
    #allocation6 [shape = 's32[1]{0}', space=sflag, size = 0x4, scoped, tag = 'scoped memory for tpu_custom_call.1']
    #allocation7 [shape = 'u8[8192]{0}', space=vmem, size = 0x2000, scoped, tag = 'output window, operand 0, single buffered']
    %7 = vsyncpa [#allocation3], 0
    %8 = vsyncpa [#allocation6], 0
    %9 = vsyncpa [#allocation4], 0
    // Predicated region
    $region2: #{tpu_custom_call.1} parent=1 // pred_check
      _
    $region3: #{tpu_custom_call.1} parent=1 // pred_check_branch
      %11 = sbr.rel (0) target = $region5
    $region4: #{tpu_custom_call.1} parent=1 // pred_region
      %s13 = ssub.s32 256, 256
      %14 = vsyncadd [#allocation3], %s13
      %s15 = sshll.u32 [#allocation2], 4
      %s16 = int_to_ptr.vmem [resolvable:$true] %s15
      %21 = dma.hbm_to_vmem [thread:$0]  %s0, 256, %s16, [#allocation3], 128, 128, 8
    $region5: #{tpu_custom_call.1} parent=1 // pred_fallthru
      _
    // Predicated region
    $region6: #{tpu_custom_call.1} parent=1 // pred_check
      _
    $region7: #{tpu_custom_call.1} parent=1 // pred_check_branch
      %23 = sbr.rel (0) target = $region9
    $region8: #{tpu_custom_call.1} parent=1 // pred_region
      %s25 = ssub.s32 256, 256
      %26 = vsyncadd [#allocation6], %s25
      %s27 = sshll.u32 [#allocation5], 4
      %s28 = int_to_ptr.vmem [resolvable:$true] %s27
      %33 = dma.hbm_to_vmem [thread:$0]  %s1, 256, %s28, [#allocation6], 128, 128, 8
    $region9: #{tpu_custom_call.1} parent=1 // pred_fallthru
      _
    // Predicated region
    $region10: #{tpu_custom_call.1} parent=1 // pred_check
      _
    $region11: #{tpu_custom_call.1} parent=1 // pred_check_branch
      %35 = sbr.rel (0) target = $region13
    $region12: #{tpu_custom_call.1} parent=1 // pred_region
      %36 = dma.done [#allocation3], 256
    $region13: #{tpu_custom_call.1} parent=1 // pred_fallthru
      _
    // Predicated region
    $region14: #{tpu_custom_call.1} parent=1 // pred_check
      _
    $region15: #{tpu_custom_call.1} parent=1 // pred_check_branch
      %38 = sbr.rel (0) target = $region17
    $region16: #{tpu_custom_call.1} parent=1 // pred_region
      %39 = dma.done [#allocation6], 256
    $region17: #{tpu_custom_call.1} parent=1 // pred_fallthru
      _
    %p40 = scmp.eq.s32.totalorder 0, 0
    // Predicated region
    $region18: #{tpu_custom_call.1} parent=1 // pred_check
      %p41 = pneg %p40
    $region19: #{tpu_custom_call.1} parent=1 // pred_check_branch
      %43 = sbr.rel (%p41) target = $region21
    $region20: #{tpu_custom_call.1} parent=1 // pred_region
      %44 = vst [vmem:[#allocation7] sm:$0xff] 0.0
      %45 = vst [vmem:[#allocation7 + $0x8] sm:$0xff] 0.0
    $region21: #{tpu_custom_call.1} parent=1 // pred_fallthru
      _
    %v46 = vld [vmem:[#allocation5] sm:$0xff]
    %v47 = vld [vmem:[#allocation5 + $0x8] sm:$0xff]
    %v48 = vld [vmem:[#allocation2] sm:$0xff]
    %v49 = vld [vmem:[#allocation2 + $0x8] sm:$0xff]
    %v50 = vsub.f32 %v46, %v48
    %v51 = vsub.f32 %v47, %v49
    %v52 = vmul.f32 %v50, %v50
    %v53 = vmul.f32 %v51, %v51
    %v54 = vld [vmem:[#allocation7] sm:$0xff]
    %v55 = vld [vmem:[#allocation7 + $0x8] sm:$0xff]
    %v56 = vadd.f32 %v52, 0.0
    %v57 = vadd.f32 %v53, 0.0
    %v58 = vadd.f32 %v54, %v56
    %v59 = vadd.f32 %v55, %v57
    %60 = vst [vmem:[#allocation7] sm:$0xff] %v58
    %61 = vst [vmem:[#allocation7 + $0x8] sm:$0xff] %v59
    // Predicated region
    $region22: #{tpu_custom_call.1} parent=1 // pred_check
      _
    $region23: #{tpu_custom_call.1} parent=1 // pred_check_branch
      %63 = sbr.rel (0) target = $region25
    $region24: #{tpu_custom_call.1} parent=1 // pred_region
      %s65 = ssub.s32 256, 256
      %66 = vsyncadd [#allocation4], %s65
      %s67 = sshll.u32 [#allocation7], 4
      %s68 = int_to_ptr.vmem [resolvable:$true] %s67
      %73 = dma.vmem_to_hbm [thread:$0]  %s68, 256, %s2, [#allocation4], 128, 128, 8
    $region25: #{tpu_custom_call.1} parent=1 // pred_fallthru
      _
    // Predicated region
    $region26: #{tpu_custom_call.1} parent=1 // pred_check
      _
    $region27: #{tpu_custom_call.1} parent=1 // pred_check_branch
      %75 = sbr.rel (0) target = $region29
    $region28: #{tpu_custom_call.1} parent=1 // pred_region
      %76 = dma.done [#allocation4], 256
    $region29: #{tpu_custom_call.1} parent=1 // pred_fallthru
      _
    %77 = vsyncpa [#allocation3], 1
    %78 = vsyncpa [#allocation6], 1
    %79 = vsyncpa [#allocation4], 1

</llo_original>
